<compile_context>
chip_gen: v5e
topology: v5e:2x2
jax: 0.10.0
libtpu: 0.0.40
codegen_flags: <defaults>
</compile_context>

<pallas_src>
import functools

import numpy as np
import jax
import jax.numpy as jnp
from jax.experimental import pallas as pl
from jax.experimental.pallas import tpu as pltpu

_NEG = -1e30  # "minus infinity" that stays finite through the exp/log chain


def _reco_kernel(lab_row_ref, lab_col_ref, feat_ref, sup_ref, out_ref, *,
                 alpha, beta, gamma, loss_scale, positive_realm_weight,
                 n_rel, num_classes, bs, ss):
    f32 = jnp.float32
    tile = pl.program_id(0)
    tile_bs = sup_ref.shape[0]
    ss_p = feat_ref.shape[0]
    c_p = sup_ref.shape[1]

    lab_row = lab_row_ref[...]                       # (tile_bs, 1) int32 (pad rows = -2)
    lab_col = lab_col_ref[...]                       # (1, ss_p)   int32 (pad cols = -1)
    sup = sup_ref[...]                               # (tile_bs, c_p) f32, already /supt, pads = -1e30

    # Anchor rows live inside the features block: slice them, no second HBM operand.
    row0 = pl.multiple_of(tile * tile_bs, tile_bs)
    anchor = feat_ref[pl.ds(row0, tile_bs), :]       # (tile_bs, d_p) bf16, pre-scaled by 1/sqrt(T)

    # anchor . features^T on the MXU, "NT" orientation, f32 accumulation.
    adc = jax.lax.dot_general(
        anchor, feat_ref[...],
        dimension_numbers=(((1,), (1,)), ((), ())),
        preferred_element_type=f32)                  # (tile_bs, ss_p)

    col = jax.lax.broadcasted_iota(jnp.int32, (tile_bs, ss_p), 1)
    row_g = jax.lax.broadcasted_iota(jnp.int32, (tile_bs, ss_p), 0) + tile * tile_bs
    col_valid = col < ss
    is_diag = row_g == col

    adc = jnp.where(col_valid, adc, _NEG)            # padded contrast columns -> exp() == 0

    # Masks rebuilt from labels on the VPU (no extra HBM traffic).
    same = lab_row == lab_col                        # (tile_bs, ss_p)
    pos_mask = jnp.where(same & jnp.logical_not(is_diag), 1.0, 0.0)

    # TODO(synk): the original loads relation sets from a JSON file and subsamples
    # them with randperm/Bernoulli on the host; here the sets are the synthetic,
    # deterministic {c, c+1, ..., c+n_rel-1} mod C (same as the numpy reference).
    in_rel = jnp.zeros((tile_bs, ss_p), jnp.bool_)
    for k in range(n_rel):
        rel_c = lab_row + k
        rel_c = jnp.where(rel_c < num_classes, rel_c, rel_c - num_classes)  # branchless mod
        in_rel = in_rel | (rel_c == lab_col)
    rel_mask = jnp.where(in_rel, 0.0, 1.0) + pos_mask

    # Row max over the concatenated [sup | adc].
    logits_max = jnp.maximum(jnp.max(sup, axis=1, keepdims=True),
                             jnp.max(adc, axis=1, keepdims=True))
    logits_sup = sup - logits_max
    logits_feat = adc - logits_max

    exp_sup = jnp.exp(logits_sup)
    exp_feat = jnp.exp(logits_feat)                  # hoisted: reused in both denominators

    # Main log-softmax denominator: ones on the sup part, gamma * (no-self) on the feat part.
    feat_nodiag_sum = jnp.sum(jnp.where(is_diag, 0.0, exp_feat), axis=1, keepdims=True)
    exp_sum = jnp.sum(exp_sup, axis=1, keepdims=True) + gamma * feat_nodiag_sum
    log_denom = jnp.log(exp_sum + 1e-12)
    log_prob_sup = logits_sup - log_denom
    log_prob_feat = logits_feat - log_denom

    # Relation-realm log-softmax over the feature part only.
    rel_exp_sum = gamma * jnp.sum(exp_feat * rel_mask, axis=1, keepdims=True)
    rel_log_prob = logits_feat - jnp.log(rel_exp_sum + 1e-12)

    # Positive masks: [one_hot * beta | pos_mask * alpha].
    cls = jax.lax.broadcasted_iota(jnp.int32, (tile_bs, c_p), 1)
    mask_sup = jnp.where(lab_row == cls, beta, 0.0)
    mask_feat = pos_mask * alpha

    mask_sum = (jnp.sum(mask_sup, axis=1, keepdims=True)
                + jnp.sum(mask_feat, axis=1, keepdims=True))
    # Guard padded rows (mask_sum == 0); real rows with beta > 0 are untouched.
    inv_mask_sum = pl.reciprocal(jnp.where(mask_sum > 0.0, mask_sum, 1.0), approx=False)

    mean_log_prob_pos = (jnp.sum(mask_sup * log_prob_sup, axis=1, keepdims=True)
                         + jnp.sum(mask_feat * log_prob_feat, axis=1, keepdims=True)
                         ) * inv_mask_sum
    mean_log_prob_rel = jnp.sum(mask_feat * rel_log_prob, axis=1, keepdims=True) * inv_mask_sum

    loss_row = -loss_scale * (mean_log_prob_pos
                              + positive_realm_weight * mean_log_prob_rel)   # (tile_bs, 1)

    row_valid = (jax.lax.broadcasted_iota(jnp.int32, (tile_bs, 1), 0)
                 + tile * tile_bs) < bs
    loss_row = jnp.where(row_valid, loss_row, 0.0)

    partial = jnp.sum(loss_row, axis=0, keepdims=True)            # (1, 1)
    out_ref[...] = jnp.broadcast_to(partial, out_ref.shape)       # lane-dense (1, 128) store


def _round_up(x, m):
    return ((x + m - 1) // m) * m


def reco_loss(features, labels, sup_logits, *, K=7, num_classes=16, n_rel=3,
              alpha=1.0, beta=1.0, gamma=1.0, supt=1.0, temperature=1.0,
              base_temperature=None, positive_realm_weight=1.0):
    base_temperature = temperature if base_temperature is None else base_temperature
    ss, d = features.shape
    bs = (ss - K) // 2
    c = num_classes
    f32 = jnp.float32

    labels = labels.astype(jnp.int32)
    features = features.astype(f32)
    sup_logits = sup_logits.astype(f32)

    # Lane-dense padding: last dims -> multiples of 128, anchor rows -> multiples of 16.
    ss_p = _round_up(ss, 128)
    d_p = _round_up(d, 128)
    c_p = _round_up(c, 128)
    if bs <= 128:
        tile_bs = _round_up(max(bs, 1), 16)
        bs_p = tile_bs
    else:
        tile_bs = 128
        bs_p = _round_up(bs, tile_bs)
    num_tiles = bs_p // tile_bs

    # Fold 1/temperature into the features on both sides of the dot
    # ((f_i/sqrt(T)) . (f_j/sqrt(T)) == f_i . f_j / T); MXU operands in bf16.
    scale = 1.0 / float(np.sqrt(temperature))
    feats_p = jnp.zeros((ss_p, d_p), f32).at[:ss, :d].set(features * scale)
    feats_bf = feats_p.astype(jnp.bfloat16)

    # sup_logits / supt, padded rows/cols with a large negative so exp() -> 0.
    sup_p = jnp.full((bs_p, c_p), _NEG, f32).at[:bs, :c].set(sup_logits * (1.0 / supt))

    # Labels: anchor labels as a column, all labels as a lane-dense row.
    lab_col = jnp.full((1, ss_p), -1, jnp.int32).at[0, :ss].set(labels)
    lab_row = jnp.full((bs_p, 1), -2, jnp.int32).at[:bs, 0].set(labels[:bs])

    kern = functools.partial(
        _reco_kernel, alpha=alpha, beta=beta, gamma=gamma,
        loss_scale=temperature / base_temperature,
        positive_realm_weight=positive_realm_weight,
        n_rel=n_rel, num_classes=num_classes, bs=bs, ss=ss)

    out = pl.pallas_call(
        kern,
        out_shape=jax.ShapeDtypeStruct((1, 128 * num_tiles), f32),
        grid=(num_tiles,),
        in_specs=[
            pl.BlockSpec((tile_bs, 1), lambda i: (i, 0)),      # anchor labels (int32)
            pl.BlockSpec((1, ss_p), lambda i: (0, 0)),         # all labels (int32)
            pl.BlockSpec((ss_p, d_p), lambda i: (0, 0)),       # features (bf16, shared block)
            pl.BlockSpec((tile_bs, c_p), lambda i: (i, 0)),    # sup logits (f32)
        ],
        out_specs=pl.BlockSpec((1, 128), lambda i: (0, i)),    # lane-dense per-tile partial
        compiler_params=pltpu.CompilerParams(
            dimension_semantics=("parallel",)),
    )(lab_row, lab_col, feats_bf, sup_p)

    partial_sums = out.reshape(num_tiles, 128)[:, 0]
    return jnp.sum(partial_sums) / bs


def reco_ref(features, labels, sup_logits, *, K, num_classes, n_rel,
             alpha, beta, gamma, supt, temperature, base_temperature,
             positive_realm_weight):
    """Pure numpy reference mirroring the PyTorch forward (same deterministic
    synthetic relation sets)."""
    feats = np.asarray(features, np.float32)
    labs = np.asarray(labels, np.int64)
    sup = np.asarray(sup_logits, np.float32)
    ss = feats.shape[0]
    bs = (ss - K) // 2
    C = num_classes

    mask = (labs[:bs, None] == labs[None, :]).astype(np.float32)
    adc = feats[:bs] @ feats.T / temperature
    adc = np.concatenate([sup / supt, adc], axis=1)
    logits = adc - adc.max(axis=1, keepdims=True)

    logits_mask = np.ones((bs, ss), np.float32)
    logits_mask[np.arange(bs), np.arange(bs)] = 0.0
    mask = mask * logits_mask

    rel_sets = (labs[:bs, None] + np.arange(n_rel)[None, :]) % C
    in_rel = (rel_sets[:, :, None] == labs[None, None, :]).any(axis=1)
    qrm = (~in_rel).astype(np.float32) + mask
    rel_logits_mask = gamma * qrm
    rel_exp = np.exp(logits[:, C:]) * rel_logits_mask
    rel_log_prob = logits[:, C:] - np.log(rel_exp.sum(1, keepdims=True) + 1e-12)

    logits_mask_full = np.concatenate(
        [np.ones((bs, C), np.float32), gamma * logits_mask], axis=1)
    oh = np.eye(C, dtype=np.float32)[labs[:bs]]
    mask_full = np.concatenate([oh * beta, mask * alpha], axis=1)

    exp_logits = np.exp(logits) * logits_mask_full
    log_prob = logits - np.log(exp_logits.sum(1, keepdims=True) + 1e-12)

    mlpp = (mask_full * log_prob).sum(1) / mask_full.sum(1)
    mlprp = (mask_full[:, C:] * rel_log_prob).sum(1) / mask_full.sum(1)
    loss = -(temperature / base_temperature) * (mlpp + positive_realm_weight * mlprp)
    return float(loss.mean())


if __name__ == "__main__":
    # Small, forward-consistent shapes: SS = 2*BS + K
    K = 7
    BS = 8
    SS = 2 * BS + K          # 23 samples (anchors + views + K queue/extra)
    D = 32                   # feature dim
    C = 16                   # num_classes (scaled down from 1000)
    N_REL = 3                # relations per class (synthetic)

    hp = dict(K=K, num_classes=C, n_rel=N_REL, alpha=1.0, beta=1.0, gamma=1.0,
              supt=1.0, temperature=1.0, base_temperature=1.0,
              positive_realm_weight=1.0)

    key = jax.random.PRNGKey(0)
    k1, k2, k3 = jax.random.split(key, 3)
    features = jax.random.normal(k1, (SS, D), jnp.float32)
    features = features / jnp.linalg.norm(features, axis=1, keepdims=True)
    labels = jax.random.randint(k2, (SS,), 0, C)
    sup_logits = jax.random.normal(k3, (BS, C), jnp.float32)

    loss = reco_loss(features, labels, sup_logits, **hp)
    loss = jax.block_until_ready(loss)
    loss_f = float(loss)

    # Reference 1: tight pipeline check with the MXU's bf16 input rounding emulated.
    feats_bf16_rounded = np.asarray(features.astype(jnp.bfloat16).astype(jnp.float32))
    ref_bf = reco_ref(feats_bf16_rounded, labels, sup_logits, **hp)
    # Reference 2: plain f32 reference (loose tolerance covers bf16 MXU inputs).
    ref_f32 = reco_ref(np.asarray(features), labels, sup_logits, **hp)

    assert np.isfinite(loss_f), "kernel produced non-finite loss"
    assert np.allclose(loss_f, ref_bf, rtol=2e-3, atol=2e-3), (loss_f, ref_bf)
    assert np.allclose(loss_f, ref_f32, rtol=5e-2, atol=5e-2), (loss_f, ref_f32)

    print("KERNEL_OK")
</pallas_src>

<mosaic_0001>
module attributes {stable_mosaic.version = 11 : i64} {
  func.func @_reco_kernel(%arg0: i32, %arg1: memref<16x1xi32, #tpu.memory_space<vmem>>, %arg2: memref<1x128xi32, #tpu.memory_space<vmem>>, %arg3: memref<128x128xbf16, #tpu.memory_space<vmem>>, %arg4: memref<16x128xf32, #tpu.memory_space<vmem>>, %arg5: memref<1x128xf32, #tpu.memory_space<vmem>>) attributes {dimension_semantics = [#tpu.dimension_semantics<parallel>], iteration_bounds = array<i64: 1>, scalar_prefetch = 0 : i64, scratch_operands = 0 : i64, tpu.core_type = #tpu.core_type<tc>, window_params = [{transform_indices = @transform_0, window_bounds = array<i64: 16, 1>}, {pipeline_mode = #tpu.pipeline_mode<synchronous>, transform_indices = @transform_1, window_bounds = array<i64: 1, 128>}, {pipeline_mode = #tpu.pipeline_mode<synchronous>, transform_indices = @transform_2, window_bounds = array<i64: 128, 128>}, {transform_indices = @transform_3, window_bounds = array<i64: 16, 128>}, {transform_indices = @transform_4, window_bounds = array<i64: 1, 128>}]} {
    %c0 = arith.constant 0 : index
    %c0_0 = arith.constant 0 : index
    %0 = vector.load %arg1[%c0, %c0_0] : memref<16x1xi32, #tpu.memory_space<vmem>>, vector<16x1xi32>
    %c0_1 = arith.constant 0 : index
    %c0_2 = arith.constant 0 : index
    %1 = vector.load %arg2[%c0_1, %c0_2] : memref<1x128xi32, #tpu.memory_space<vmem>>, vector<1x128xi32>
    %c0_3 = arith.constant 0 : index
    %c0_4 = arith.constant 0 : index
    %2 = vector.load %arg4[%c0_3, %c0_4] : memref<16x128xf32, #tpu.memory_space<vmem>>, vector<16x128xf32>
    %c16_i32 = arith.constant 16 : i32
    %3 = arith.muli %arg0, %c16_i32 : i32
    %4 = tpu.assume_multiple %3, 16 : i32
    %5 = arith.index_cast %4 : i32 to index
    %c0_5 = arith.constant 0 : index
    %6 = vector.load %arg3[%5, %c0_5] : memref<128x128xbf16, #tpu.memory_space<vmem>>, vector<16x128xbf16>
    %c0_6 = arith.constant 0 : index
    %c0_7 = arith.constant 0 : index
    %7 = vector.load %arg3[%c0_6, %c0_7] : memref<128x128xbf16, #tpu.memory_space<vmem>>, vector<128x128xbf16>
    %cst = arith.constant dense<0.000000e+00> : vector<16x128xf32>
    %8 = tpu.matmul %6, %7, %cst {dimension_numbers = #tpu.dot_dimension_numbers<[1], [1], [0], [0], [0, 0, 1, 0], [], []>} : vector<16x128xbf16>, vector<128x128xbf16>, vector<16x128xf32> -> vector<16x128xf32>
    %9 = tpu.iota {dimensions = array<i32: 1>} : vector<16x128xi32>
    %10 = tpu.iota {dimensions = array<i32: 0>} : vector<16x128xi32>
    %c16_i32_8 = arith.constant 16 : i32
    %11 = arith.muli %arg0, %c16_i32_8 : i32
    %12 = vector.broadcast %11 : i32 to vector<16x128xi32>
    %13 = arith.addi %10, %12 : vector<16x128xi32>
    %c23_i32 = arith.constant 23 : i32
    %14 = vector.broadcast %c23_i32 : i32 to vector<16x128xi32>
    %15 = arith.cmpi slt, %9, %14 : vector<16x128xi32>
    %16 = arith.cmpi eq, %13, %9 : vector<16x128xi32>
    %cst_9 = arith.constant -1.000000e+30 : f32
    %17 = vector.broadcast %cst_9 : f32 to vector<16x128xf32>
    %18 = arith.select %15, %8, %17 : vector<16x128xi1>, vector<16x128xf32>
    %19 = vector.broadcast %0 : vector<16x1xi32> to vector<16x128xi32>
    %20 = vector.broadcast %1 : vector<1x128xi32> to vector<16x128xi32>
    %21 = arith.cmpi eq, %19, %20 : vector<16x128xi32>
    %cst_10 = arith.constant dense<true> : vector<16x128xi1>
    %22 = arith.xori %16, %cst_10 : vector<16x128xi1>
    %23 = arith.andi %21, %22 : vector<16x128xi1>
    %cst_11 = arith.constant 1.000000e+00 : f32
    %cst_12 = arith.constant 0.000000e+00 : f32
    %24 = vector.broadcast %cst_11 : f32 to vector<16x128xf32>
    %25 = vector.broadcast %cst_12 : f32 to vector<16x128xf32>
    %26 = arith.select %23, %24, %25 : vector<16x128xi1>, vector<16x128xf32>
    %false = arith.constant false
    %27 = vector.broadcast %false : i1 to vector<16x128xi1>
    %c0_i32 = arith.constant 0 : i32
    %28 = vector.broadcast %c0_i32 : i32 to vector<16x1xi32>
    %29 = arith.addi %0, %28 : vector<16x1xi32>
    %c16_i32_13 = arith.constant 16 : i32
    %30 = vector.broadcast %c16_i32_13 : i32 to vector<16x1xi32>
    %31 = arith.cmpi slt, %29, %30 : vector<16x1xi32>
    %c16_i32_14 = arith.constant 16 : i32
    %32 = vector.broadcast %c16_i32_14 : i32 to vector<16x1xi32>
    %33 = arith.subi %29, %32 : vector<16x1xi32>
    %34 = arith.select %31, %29, %33 : vector<16x1xi1>, vector<16x1xi32>
    %35 = vector.broadcast %34 : vector<16x1xi32> to vector<16x128xi32>
    %36 = vector.broadcast %1 : vector<1x128xi32> to vector<16x128xi32>
    %37 = arith.cmpi eq, %35, %36 : vector<16x128xi32>
    %38 = arith.ori %27, %37 : vector<16x128xi1>
    %c1_i32 = arith.constant 1 : i32
    %39 = vector.broadcast %c1_i32 : i32 to vector<16x1xi32>
    %40 = arith.addi %0, %39 : vector<16x1xi32>
    %c16_i32_15 = arith.constant 16 : i32
    %41 = vector.broadcast %c16_i32_15 : i32 to vector<16x1xi32>
    %42 = arith.cmpi slt, %40, %41 : vector<16x1xi32>
    %c16_i32_16 = arith.constant 16 : i32
    %43 = vector.broadcast %c16_i32_16 : i32 to vector<16x1xi32>
    %44 = arith.subi %40, %43 : vector<16x1xi32>
    %45 = arith.select %42, %40, %44 : vector<16x1xi1>, vector<16x1xi32>
    %46 = vector.broadcast %45 : vector<16x1xi32> to vector<16x128xi32>
    %47 = vector.broadcast %1 : vector<1x128xi32> to vector<16x128xi32>
    %48 = arith.cmpi eq, %46, %47 : vector<16x128xi32>
    %49 = arith.ori %38, %48 : vector<16x128xi1>
    %c2_i32 = arith.constant 2 : i32
    %50 = vector.broadcast %c2_i32 : i32 to vector<16x1xi32>
    %51 = arith.addi %0, %50 : vector<16x1xi32>
    %c16_i32_17 = arith.constant 16 : i32
    %52 = vector.broadcast %c16_i32_17 : i32 to vector<16x1xi32>
    %53 = arith.cmpi slt, %51, %52 : vector<16x1xi32>
    %c16_i32_18 = arith.constant 16 : i32
    %54 = vector.broadcast %c16_i32_18 : i32 to vector<16x1xi32>
    %55 = arith.subi %51, %54 : vector<16x1xi32>
    %56 = arith.select %53, %51, %55 : vector<16x1xi1>, vector<16x1xi32>
    %57 = vector.broadcast %56 : vector<16x1xi32> to vector<16x128xi32>
    %58 = vector.broadcast %1 : vector<1x128xi32> to vector<16x128xi32>
    %59 = arith.cmpi eq, %57, %58 : vector<16x128xi32>
    %60 = arith.ori %49, %59 : vector<16x128xi1>
    %cst_19 = arith.constant 0.000000e+00 : f32
    %cst_20 = arith.constant 1.000000e+00 : f32
    %61 = vector.broadcast %cst_19 : f32 to vector<16x128xf32>
    %62 = vector.broadcast %cst_20 : f32 to vector<16x128xf32>
    %63 = arith.select %60, %61, %62 : vector<16x128xi1>, vector<16x128xf32>
    %64 = arith.addf %63, %26 : vector<16x128xf32>
    %cst_21 = arith.constant dense<0xFF800000> : vector<16xf32>
    %65 = vector.multi_reduction <maximumf>, %2, %cst_21 [1] : vector<16x128xf32> to vector<16xf32>
    %66 = vector.shape_cast %65 : vector<16xf32> to vector<16x1xf32>
    %cst_22 = arith.constant dense<0xFF800000> : vector<16xf32>
    %67 = vector.multi_reduction <maximumf>, %18, %cst_22 [1] : vector<16x128xf32> to vector<16xf32>
    %68 = vector.shape_cast %67 : vector<16xf32> to vector<16x1xf32>
    %69 = arith.maximumf %66, %68 : vector<16x1xf32>
    %70 = vector.broadcast %69 : vector<16x1xf32> to vector<16x128xf32>
    %71 = arith.subf %2, %70 : vector<16x128xf32>
    %72 = vector.broadcast %69 : vector<16x1xf32> to vector<16x128xf32>
    %73 = arith.subf %18, %72 : vector<16x128xf32>
    %74 = math.exp %71 : vector<16x128xf32>
    %75 = math.exp %73 : vector<16x128xf32>
    %cst_23 = arith.constant 0.000000e+00 : f32
    %76 = vector.broadcast %cst_23 : f32 to vector<16x128xf32>
    %77 = arith.select %16, %76, %75 : vector<16x128xi1>, vector<16x128xf32>
    %cst_24 = arith.constant dense<0.000000e+00> : vector<16xf32>
    %78 = vector.multi_reduction <add>, %77, %cst_24 [1] : vector<16x128xf32> to vector<16xf32>
    %79 = vector.shape_cast %78 : vector<16xf32> to vector<16x1xf32>
    %cst_25 = arith.constant dense<0.000000e+00> : vector<16xf32>
    %80 = vector.multi_reduction <add>, %74, %cst_25 [1] : vector<16x128xf32> to vector<16xf32>
    %81 = vector.shape_cast %80 : vector<16xf32> to vector<16x1xf32>
    %cst_26 = arith.constant 1.000000e+00 : f32
    %82 = vector.broadcast %cst_26 : f32 to vector<16x1xf32>
    %83 = arith.mulf %82, %79 : vector<16x1xf32>
    %84 = arith.addf %81, %83 : vector<16x1xf32>
    %cst_27 = arith.constant 9.99999996E-13 : f32
    %85 = vector.broadcast %cst_27 : f32 to vector<16x1xf32>
    %86 = arith.addf %84, %85 : vector<16x1xf32>
    %87 = math.log %86 : vector<16x1xf32>
    %88 = vector.broadcast %87 : vector<16x1xf32> to vector<16x128xf32>
    %89 = arith.subf %71, %88 : vector<16x128xf32>
    %90 = vector.broadcast %87 : vector<16x1xf32> to vector<16x128xf32>
    %91 = arith.subf %73, %90 : vector<16x128xf32>
    %92 = arith.mulf %75, %64 : vector<16x128xf32>
    %cst_28 = arith.constant dense<0.000000e+00> : vector<16xf32>
    %93 = vector.multi_reduction <add>, %92, %cst_28 [1] : vector<16x128xf32> to vector<16xf32>
    %94 = vector.shape_cast %93 : vector<16xf32> to vector<16x1xf32>
    %cst_29 = arith.constant 1.000000e+00 : f32
    %95 = vector.broadcast %cst_29 : f32 to vector<16x1xf32>
    %96 = arith.mulf %95, %94 : vector<16x1xf32>
    %cst_30 = arith.constant 9.99999996E-13 : f32
    %97 = vector.broadcast %cst_30 : f32 to vector<16x1xf32>
    %98 = arith.addf %96, %97 : vector<16x1xf32>
    %99 = math.log %98 : vector<16x1xf32>
    %100 = vector.broadcast %99 : vector<16x1xf32> to vector<16x128xf32>
    %101 = arith.subf %73, %100 : vector<16x128xf32>
    %102 = tpu.iota {dimensions = array<i32: 1>} : vector<16x128xi32>
    %103 = vector.broadcast %0 : vector<16x1xi32> to vector<16x128xi32>
    %104 = arith.cmpi eq, %103, %102 : vector<16x128xi32>
    %cst_31 = arith.constant 1.000000e+00 : f32
    %cst_32 = arith.constant 0.000000e+00 : f32
    %105 = vector.broadcast %cst_31 : f32 to vector<16x128xf32>
    %106 = vector.broadcast %cst_32 : f32 to vector<16x128xf32>
    %107 = arith.select %104, %105, %106 : vector<16x128xi1>, vector<16x128xf32>
    %cst_33 = arith.constant 1.000000e+00 : f32
    %108 = vector.broadcast %cst_33 : f32 to vector<16x128xf32>
    %109 = arith.mulf %26, %108 : vector<16x128xf32>
    %cst_34 = arith.constant dense<0.000000e+00> : vector<16xf32>
    %110 = vector.multi_reduction <add>, %107, %cst_34 [1] : vector<16x128xf32> to vector<16xf32>
    %111 = vector.shape_cast %110 : vector<16xf32> to vector<16x1xf32>
    %cst_35 = arith.constant dense<0.000000e+00> : vector<16xf32>
    %112 = vector.multi_reduction <add>, %109, %cst_35 [1] : vector<16x128xf32> to vector<16xf32>
    %113 = vector.shape_cast %112 : vector<16xf32> to vector<16x1xf32>
    %114 = arith.addf %111, %113 : vector<16x1xf32>
    %cst_36 = arith.constant 0.000000e+00 : f32
    %115 = vector.broadcast %cst_36 : f32 to vector<16x1xf32>
    %116 = arith.cmpf ogt, %114, %115 : vector<16x1xf32>
    %cst_37 = arith.constant 1.000000e+00 : f32
    %117 = vector.broadcast %cst_37 : f32 to vector<16x1xf32>
    %118 = arith.select %116, %114, %117 : vector<16x1xi1>, vector<16x1xf32>
    %119 = tpu.reciprocal %118 : vector<16x1xf32> -> vector<16x1xf32>
    %120 = arith.mulf %107, %89 : vector<16x128xf32>
    %cst_38 = arith.constant dense<0.000000e+00> : vector<16xf32>
    %121 = vector.multi_reduction <add>, %120, %cst_38 [1] : vector<16x128xf32> to vector<16xf32>
    %122 = vector.shape_cast %121 : vector<16xf32> to vector<16x1xf32>
    %123 = arith.mulf %109, %91 : vector<16x128xf32>
    %cst_39 = arith.constant dense<0.000000e+00> : vector<16xf32>
    %124 = vector.multi_reduction <add>, %123, %cst_39 [1] : vector<16x128xf32> to vector<16xf32>
    %125 = vector.shape_cast %124 : vector<16xf32> to vector<16x1xf32>
    %126 = arith.addf %122, %125 : vector<16x1xf32>
    %127 = arith.mulf %126, %119 : vector<16x1xf32>
    %128 = arith.mulf %109, %101 : vector<16x128xf32>
    %cst_40 = arith.constant dense<0.000000e+00> : vector<16xf32>
    %129 = vector.multi_reduction <add>, %128, %cst_40 [1] : vector<16x128xf32> to vector<16xf32>
    %130 = vector.shape_cast %129 : vector<16xf32> to vector<16x1xf32>
    %131 = arith.mulf %130, %119 : vector<16x1xf32>
    %cst_41 = arith.constant 1.000000e+00 : f32
    %132 = vector.broadcast %cst_41 : f32 to vector<16x1xf32>
    %133 = arith.mulf %132, %131 : vector<16x1xf32>
    %134 = arith.addf %127, %133 : vector<16x1xf32>
    %cst_42 = arith.constant -1.000000e+00 : f32
    %135 = vector.broadcast %cst_42 : f32 to vector<16x1xf32>
    %136 = arith.mulf %135, %134 : vector<16x1xf32>
    %137 = tpu.iota {dimensions = array<i32: 0>} : vector<16x1xi32>
    %c16_i32_43 = arith.constant 16 : i32
    %138 = arith.muli %arg0, %c16_i32_43 : i32
    %139 = vector.broadcast %138 : i32 to vector<16x1xi32>
    %140 = arith.addi %137, %139 : vector<16x1xi32>
    %c8_i32 = arith.constant 8 : i32
    %141 = vector.broadcast %c8_i32 : i32 to vector<16x1xi32>
    %142 = arith.cmpi slt, %140, %141 : vector<16x1xi32>
    %cst_44 = arith.constant 0.000000e+00 : f32
    %143 = vector.broadcast %cst_44 : f32 to vector<16x1xf32>
    %144 = arith.select %142, %136, %143 : vector<16x1xi1>, vector<16x1xf32>
    %cst_45 = arith.constant dense<0.000000e+00> : vector<1xf32>
    %145 = vector.multi_reduction <add>, %144, %cst_45 [0] : vector<16x1xf32> to vector<1xf32>
    %146 = vector.shape_cast %145 : vector<1xf32> to vector<1x1xf32>
    %147 = vector.shape_cast %146 : vector<1x1xf32> to vector<1x1xf32>
    %148 = vector.broadcast %147 : vector<1x1xf32> to vector<1x128xf32>
    %c0_46 = arith.constant 0 : index
    %c0_47 = arith.constant 0 : index
    %149 = vector.load %arg5[%c0_46, %c0_47] : memref<1x128xf32, #tpu.memory_space<vmem>>, vector<1x128xf32>
    tpu.vector_store %arg5[%c0_46, %c0_47], %148 {strides = array<i32>} : memref<1x128xf32, #tpu.memory_space<vmem>>, vector<1x128xf32>,
    return
  }
  func.func @transform_0(%arg0: i32) -> (i32, i32) {
    %c0_i32 = arith.constant 0 : i32
    %c0_i32_0 = arith.constant 0 : i32
    return %arg0, %c0_i32 : i32, i32
  }
  func.func @transform_1(%arg0: i32) -> (i32, i32) {
    %c0_i32 = arith.constant 0 : i32
    %c0_i32_0 = arith.constant 0 : i32
    %c0_i32_1 = arith.constant 0 : i32
    return %c0_i32, %c0_i32_0 : i32, i32
  }
  func.func @transform_2(%arg0: i32) -> (i32, i32) {
    %c0_i32 = arith.constant 0 : i32
    %c0_i32_0 = arith.constant 0 : i32
    %c0_i32_1 = arith.constant 0 : i32
    return %c0_i32, %c0_i32_0 : i32, i32
  }
  func.func @transform_3(%arg0: i32) -> (i32, i32) {
    %c0_i32 = arith.constant 0 : i32
    %c0_i32_0 = arith.constant 0 : i32
    return %arg0, %c0_i32 : i32, i32
  }
  func.func @transform_4(%arg0: i32) -> (i32, i32) {
    %c0_i32 = arith.constant 0 : i32
    %c0_i32_0 = arith.constant 0 : i32
    return %c0_i32, %arg0 : i32, i32
  }
}

</mosaic_0001>

<llo_original>
// kernel: tpu_custom_call.1
$region0: #{tpu_custom_call.1}
  #allocation0 [shape = 'u32[]', space=smem, size = 0x4, offset = 0x4, fixed_abs, tag = 'smem constant byte address 0x4 - core index']
  #allocation1 [shape = 'u32[72,128]{1,0:T(1,128)}', space=vmem, size = 0x9000, scoped, tag = 'internal scratch']
  %s0 = inlined_call_operand.vmem [shape: s32[16,1], index: 0, kind: input, shape index: {}]
  %s1 = inlined_call_operand.vmem [shape: s32[1,128], index: 1, kind: input, shape index: {}]
  %s2 = inlined_call_operand.hbm [shape: bf16[128,128], index: 2, kind: input, shape index: {}]
  %s3 = inlined_call_operand.vmem [shape: f32[16,128], index: 3, kind: input, shape index: {}]
  %s4 = inlined_call_operand.hbm [shape: f32[1,128], index: 4, kind: output, shape index: {}]
  %s5 = sld [smem:[#allocation0]]
  $region30: #{tpu_custom_call.1} parent=0
    _
  %s7 = ssub.s32 1, %s5
  %s8 = scalar_select 0, %s7, %s5
  $region1: #{tpu_custom_call.1} parent=0
    #allocation2 [shape = 'u8[32768]{0}', space=vmem, size = 0x8000, scoped, tag = 'input window, operand 2, single buffered']
    #allocation3 [shape = 's32[1]{0}', space=sflag, size = 0x4, scoped, tag = 'scoped memory for tpu_custom_call.1']
    #allocation4 [shape = 's32[1]{0}', space=sflag, size = 0x4, scoped, tag = 'scoped memory for tpu_custom_call.1']
    #allocation5 [shape = 'u8[512]{0}', space=vmem, size = 0x400, scoped, tag = 'output window, operand 0, single buffered']
    %9 = vsyncpa [#allocation3], 0
    %10 = vsyncpa [#allocation4], 0
    // Predicated region
    $region2: #{tpu_custom_call.1} parent=1 // pred_check
      _
    $region3: #{tpu_custom_call.1} parent=1 // pred_check_branch
      %12 = sbr.rel (0) target = $region5
    $region4: #{tpu_custom_call.1} parent=1 // pred_region
      _
    $region5: #{tpu_custom_call.1} parent=1 // pred_fallthru
      _
    // Predicated region
    $region6: #{tpu_custom_call.1} parent=1 // pred_check
      _
    $region7: #{tpu_custom_call.1} parent=1 // pred_check_branch
      %14 = sbr.rel (0) target = $region9
    $region8: #{tpu_custom_call.1} parent=1 // pred_region
      _
    $region9: #{tpu_custom_call.1} parent=1 // pred_fallthru
      _
    // Predicated region
    $region10: #{tpu_custom_call.1} parent=1 // pred_check
      _
    $region11: #{tpu_custom_call.1} parent=1 // pred_check_branch
      %16 = sbr.rel (0) target = $region13
    $region12: #{tpu_custom_call.1} parent=1 // pred_region
      %18 = vsyncadd [#allocation3], 0
      %s19 = sshll.u32 %s2, 4
      %s20 = int_to_ptr.hbm [resolvable:$true] %s19
      %s21 = sshll.u32 [#allocation2], 4
      %s22 = int_to_ptr.vmem [resolvable:$true] %s21
      %27 = dma.hbm_to_vmem [thread:$0]  %s20, 1024, %s22, [#allocation3], 64, 64, 4
    $region13: #{tpu_custom_call.1} parent=1 // pred_fallthru
      _
    // Predicated region
    $region14: #{tpu_custom_call.1} parent=1 // pred_check
      _
    $region15: #{tpu_custom_call.1} parent=1 // pred_check_branch
      %29 = sbr.rel (0) target = $region17
    $region16: #{tpu_custom_call.1} parent=1 // pred_region
      _
    $region17: #{tpu_custom_call.1} parent=1 // pred_fallthru
      _
    // Predicated region
    $region18: #{tpu_custom_call.1} parent=1 // pred_check
      _
    $region19: #{tpu_custom_call.1} parent=1 // pred_check_branch
      %31 = sbr.rel (0) target = $region21
    $region20: #{tpu_custom_call.1} parent=1 // pred_region
      %33 = dma.done [#allocation3], 1024
    $region21: #{tpu_custom_call.1} parent=1 // pred_fallthru
      _
    %v34 = vld [vmem:[%s0] sm:$0xff]
    %v35 = vld [vmem:[%s0 + $0x8] sm:$0xff]
    %v36 = vld [vmem:[%s1] sm:$0x1]
    %v37 = vld [vmem:[%s3] sm:$0xff]
    %v38 = vld [vmem:[%s3 + $0x8] sm:$0xff]
    %s39 = smul.u32 0, 16
    %s40 = sshra.s32 %s39, 3
    %s41 = sand.u32 %s39, 7
    %s42 = smul.addr %s40, 4
    %s43 = scalar_lea.vmem [#allocation2], %s42
    %v44 = vld [vmem:[%s43] sm:$0xf]
    %v45 = vld [vmem:[%s43 + $0x4] sm:$0xf]
    %v46 = vld [vmem:[#allocation2] sm:$0xf]
    %v47 = vld [vmem:[#allocation2 + $0x4] sm:$0xf]
    %v48 = vld [vmem:[#allocation2 + $0x8] sm:$0xf]
    %v49 = vld [vmem:[#allocation2 + $0xc] sm:$0xf]
    %v50 = vld [vmem:[#allocation2 + $0x10] sm:$0xf]
    %v51 = vld [vmem:[#allocation2 + $0x14] sm:$0xf]
    %v52 = vld [vmem:[#allocation2 + $0x18] sm:$0xf]
    %v53 = vld [vmem:[#allocation2 + $0x1c] sm:$0xf]
    %v54 = vld [vmem:[#allocation2 + $0x20] sm:$0xf]
    %v55 = vld [vmem:[#allocation2 + $0x24] sm:$0xf]
    %v56 = vld [vmem:[#allocation2 + $0x28] sm:$0xf]
    %v57 = vld [vmem:[#allocation2 + $0x2c] sm:$0xf]
    %v58 = vld [vmem:[#allocation2 + $0x30] sm:$0xf]
    %v59 = vld [vmem:[#allocation2 + $0x34] sm:$0xf]
    %v60 = vld [vmem:[#allocation2 + $0x38] sm:$0xf]
    %v61 = vld [vmem:[#allocation2 + $0x3c] sm:$0xf]
    %v64 = vunpack.c.l.b16 %v44
    %v65 = vunpack.c.l.b16 %v45
    %v66 = vpack.c.b16 %v65, %v64
    %v84 = vunpack.c.l.b16 %v46
    %v85 = vunpack.c.l.b16 %v47
    %v86 = vunpack.c.l.b16 %v48
    %v87 = vunpack.c.l.b16 %v49
    %v88 = vunpack.c.l.b16 %v50
    %v89 = vunpack.c.l.b16 %v51
    %v90 = vunpack.c.l.b16 %v52
    %v91 = vunpack.c.l.b16 %v53
    %v92 = vunpack.c.l.b16 %v54
    %v93 = vunpack.c.l.b16 %v55
    %v94 = vunpack.c.l.b16 %v56
    %v95 = vunpack.c.l.b16 %v57
    %v96 = vunpack.c.l.b16 %v58
    %v97 = vunpack.c.l.b16 %v59
    %v98 = vunpack.c.l.b16 %v60
    %v99 = vunpack.c.l.b16 %v61
    %v100 = vpack.c.b16 %v85, %v84
    %v101 = vpack.c.b16 %v87, %v86
    %v102 = vpack.c.b16 %v89, %v88
    %v103 = vpack.c.b16 %v91, %v90
    %v104 = vpack.c.b16 %v93, %v92
    %v105 = vpack.c.b16 %v95, %v94
    %v106 = vpack.c.b16 %v97, %v96
    %v107 = vpack.c.b16 %v99, %v98
    %116 = vmatpush.bf16.xpose.msra.mxu0 %v107
    %117 = vmatpush.bf16.xpose.msra.mxu0 %v106
    %118 = vmatpush.bf16.xpose.msra.mxu0 %v105
    %119 = vmatpush.bf16.xpose.msra.mxu0 %v104
    %120 = vmatpush.bf16.xpose.msra.mxu0 %v103
    %121 = vmatpush.bf16.xpose.msra.mxu0 %v102
    %122 = vmatpush.bf16.xpose.msra.mxu0 %v101
    %123 = vmatpush.bf16.xpose.msra.mxu0 %v100
    %124 = vmatmul.bf16.gmra.mxu0 %v66
    %v125 = vpop.f32.mrf.mxu0
    %v126 = vadd.f32 0.0, %v125
    %v127 = vpop.f32.mrf.mxu0
    %v128 = vadd.f32 0.0, %v127
    %129 = vdwg.mxu0
    %v130 = vlaneseq
    %v131 = vand.u32 %v130, 127
    %v132 = vlaneseq
    %v133 = vshrl.u32 %v132, 7
    %v134 = vadd.s32 %v133, 8
    %v135 = vstv %s39
    %v136 = vadd.s32 %v133, %v135
    %v137 = vadd.s32 %v134, %v135
    %vm138 = vcmp.lt.s32.totalorder %v131, 23
    %vm139 = vcmp.eq.s32.totalorder %v136, %v131
    %vm140 = vcmp.eq.s32.totalorder %v137, %v131
    %v141 = vsel %vm138, %v126, -1e+30
    %v142 = vsel %vm138, %v128, -1e+30
    %143 = vset.pattern.permute.xlu0 0
    %144 = vperm.xlu0 %143, %v34
    %v145 = vpop.permute.xlu0 %144
    %146 = vset.pattern.permute.xlu0 0
    %147 = vperm.xlu0 %146, %v35
    %v148 = vpop.permute.xlu0 %147
    %v149 = vperm.slane %v36, 0
    %vm150 = vcmp.eq.s32.totalorder %v145, %v149
    %vm151 = vcmp.eq.s32.totalorder %v148, %v149
    %vm152 = vmxor %vm139, 1
    %vm153 = vmxor %vm140, 1
    %vm154 = vmand %vm150, %vm152
    %vm155 = vmand %vm151, %vm153
    %v156 = vsel %vm154, 1.0, 0.0
    %v157 = vsel %vm155, 1.0, 0.0
    %vm158 = vcmp.lt.s32.totalorder %v34, 16
    %vm159 = vcmp.lt.s32.totalorder %v35, 16
    %v160 = vsub.s32 %v34, 16
    %v161 = vsub.s32 %v35, 16
    %v162 = vsel %vm158, %v34, %v160
    %v163 = vsel %vm159, %v35, %v161
    %164 = vset.pattern.permute.xlu0 0
    %165 = vperm.xlu0 %164, %v162
    %v166 = vpop.permute.xlu0 %165
    %167 = vset.pattern.permute.xlu0 0
    %168 = vperm.xlu0 %167, %v163
    %v169 = vpop.permute.xlu0 %168
    %vm170 = vcmp.eq.s32.totalorder %v166, %v149
    %vm171 = vcmp.eq.s32.totalorder %v169, %v149
    %v172 = vadd.s32 %v34, 1
    %v173 = vadd.s32 %v35, 1
    %vm174 = vcmp.lt.s32.totalorder %v172, 16
    %vm175 = vcmp.lt.s32.totalorder %v173, 16
    %v176 = vsub.s32 %v172, 16
    %v177 = vsub.s32 %v173, 16
    %v178 = vsel %vm174, %v172, %v176
    %v179 = vsel %vm175, %v173, %v177
    %180 = vset.pattern.permute.xlu0 0
    %181 = vperm.xlu0 %180, %v178
    %v182 = vpop.permute.xlu0 %181
    %183 = vset.pattern.permute.xlu0 0
    %184 = vperm.xlu0 %183, %v179
    %v185 = vpop.permute.xlu0 %184
    %vm186 = vcmp.eq.s32.totalorder %v182, %v149
    %vm187 = vcmp.eq.s32.totalorder %v185, %v149
    %vm188 = vmor %vm170, %vm186
    %vm189 = vmor %vm171, %vm187
    %v190 = vadd.s32 %v34, 2
    %v191 = vadd.s32 %v35, 2
    %vm192 = vcmp.lt.s32.totalorder %v190, 16
    %vm193 = vcmp.lt.s32.totalorder %v191, 16
    %v194 = vsub.s32 %v190, 16
    %v195 = vsub.s32 %v191, 16
    %v196 = vsel %vm192, %v190, %v194
    %v197 = vsel %vm193, %v191, %v195
    %198 = vset.pattern.permute.xlu0 0
    %199 = vperm.xlu0 %198, %v196
    %v200 = vpop.permute.xlu0 %199
    %201 = vset.pattern.permute.xlu0 0
    %202 = vperm.xlu0 %201, %v197
    %v203 = vpop.permute.xlu0 %202
    %vm204 = vcmp.eq.s32.totalorder %v200, %v149
    %vm205 = vcmp.eq.s32.totalorder %v203, %v149
    %vm206 = vmor %vm188, %vm204
    %vm207 = vmor %vm189, %vm205
    %v208 = vsel %vm206, 0.0, 1.0
    %v209 = vsel %vm207, 0.0, 1.0
    %v210 = vadd.f32 %v208, %v156
    %v211 = vadd.f32 %v209, %v157
    %212 = vmax.xlane.f32.xlu0 %v37
    %v213 = vpop.xlane.xlu0 %212
    %214 = vmax.xlane.f32.xlu0 %v38
    %v215 = vpop.xlane.xlu0 %214
    %216 = vmax.xlane.f32.xlu0 %v141
    %v217 = vpop.xlane.xlu0 %216
    %218 = vmax.xlane.f32.xlu0 %v142
    %v219 = vpop.xlane.xlu0 %218
    %v220 = vmax.f32 %v213, %v217
    %v221 = vmax.f32 %v215, %v219
    %v222 = vsub.f32 %v37, %v220
    %v223 = vsub.f32 %v38, %v221
    %v224 = vsub.f32 %v141, %v220
    %v225 = vsub.f32 %v142, %v221
    %v226 = vmul.f32 %v222, 1.442695
    %v227 = vpow.pop %v226
    %v228 = vmul.f32 %v223, 1.442695
    %v229 = vpow.pop %v228
    %v230 = vmul.f32 %v224, 1.442695
    %v231 = vpow.pop %v230
    %v232 = vmul.f32 %v225, 1.442695
    %v233 = vpow.pop %v232
    %v234 = vsel %vm139, 0.0, %v231
    %v235 = vsel %vm140, 0.0, %v233
    %236 = vadd.xlane.f32.xlu0 %v234
    %v237 = vpop.xlane.xlu0 %236
    %238 = vadd.xlane.f32.xlu0 %v235
    %v239 = vpop.xlane.xlu0 %238
    %240 = vadd.xlane.f32.xlu0 %v227
    %v241 = vpop.xlane.xlu0 %240
    %242 = vadd.xlane.f32.xlu0 %v229
    %v243 = vpop.xlane.xlu0 %242
    %v244 = vadd.f32 %v241, %v237
    %v245 = vadd.f32 %v243, %v239
    %v246 = vadd.f32 %v244, 1e-12
    %v247 = vadd.f32 %v245, 1e-12
    %v248 = vlog2.pop %v246
    %v249 = vmul.f32 %v248, 0.6931472
    %v250 = vlog2.pop %v247
    %v251 = vmul.f32 %v250, 0.6931472
    %v252 = vsub.f32 %v222, %v249
    %v253 = vsub.f32 %v223, %v251
    %v254 = vsub.f32 %v224, %v249
    %v255 = vsub.f32 %v225, %v251
    %v256 = vmul.f32 %v231, %v210
    %v257 = vmul.f32 %v233, %v211
    %258 = vadd.xlane.f32.xlu0 %v256
    %v259 = vpop.xlane.xlu0 %258
    %260 = vadd.xlane.f32.xlu0 %v257
    %v261 = vpop.xlane.xlu0 %260
    %v262 = vadd.f32 %v259, 1e-12
    %v263 = vadd.f32 %v261, 1e-12
    %v264 = vlog2.pop %v262
    %v265 = vmul.f32 %v264, 0.6931472
    %v266 = vlog2.pop %v263
    %v267 = vmul.f32 %v266, 0.6931472
    %v268 = vsub.f32 %v224, %v265
    %v269 = vsub.f32 %v225, %v267
    %vm270 = vcmp.eq.s32.totalorder %v145, %v131
    %vm271 = vcmp.eq.s32.totalorder %v148, %v131
    %v272 = vsel %vm270, 1.0, 0.0
    %v273 = vsel %vm271, 1.0, 0.0
    %274 = vadd.xlane.f32.xlu0 %v272
    %v275 = vpop.xlane.xlu0 %274
    %276 = vadd.xlane.f32.xlu0 %v273
    %v277 = vpop.xlane.xlu0 %276
    %278 = vadd.xlane.f32.xlu0 %v156
    %v279 = vpop.xlane.xlu0 %278
    %280 = vadd.xlane.f32.xlu0 %v157
    %v281 = vpop.xlane.xlu0 %280
    %v282 = vadd.f32 %v275, %v279
    %v283 = vadd.f32 %v277, %v281
    %vm284 = vcmp.gt.f32.partialorder %v282, 0.0
    %vm285 = vcmp.gt.f32.partialorder %v283, 0.0
    %v286 = vsel %vm284, %v282, 1.0
    %v287 = vsel %vm285, %v283, 1.0
    %v288 = vrcp.pop %v286
    %v289 = vmul.f32 %v286, %v288
    %v290 = vsub.f32 1.0, %v289
    %v291 = vmul.f32 %v288, %v290
    %v292 = vadd.f32 %v288, %v291
    %vm293 = vweird.f32 %v286
    %vm294 = vweird.f32 %v288
    %vm295 = vmor %vm293, %vm294
    %v296 = vsel %vm295, %v288, %v292
    %v297 = vand.u32 2147483647, %v286
    %vm298 = vcmp.eq.f32.partialorder %v297, 8.507059e+37
    %v299 = vand.u32 %v286, 2147483648
    %v300 = vor.u32 1.1754944e-38, %v299
    %v301 = vsel %vm298, %v300, %v296
    %v302 = vrcp.pop %v287
    %v303 = vmul.f32 %v287, %v302
    %v304 = vsub.f32 1.0, %v303
    %v305 = vmul.f32 %v302, %v304
    %v306 = vadd.f32 %v302, %v305
    %vm307 = vweird.f32 %v287
    %vm308 = vweird.f32 %v302
    %vm309 = vmor %vm307, %vm308
    %v310 = vsel %vm309, %v302, %v306
    %v311 = vand.u32 2147483647, %v287
    %vm312 = vcmp.eq.f32.partialorder %v311, 8.507059e+37
    %v313 = vand.u32 %v287, 2147483648
    %v314 = vor.u32 1.1754944e-38, %v313
    %v315 = vsel %vm312, %v314, %v310
    %v316 = vmul.f32 %v272, %v252
    %v317 = vmul.f32 %v273, %v253
    %318 = vadd.xlane.f32.xlu0 %v316
    %v319 = vpop.xlane.xlu0 %318
    %320 = vadd.xlane.f32.xlu0 %v317
    %v321 = vpop.xlane.xlu0 %320
    %v322 = vmul.f32 %v156, %v254
    %v323 = vmul.f32 %v157, %v255
    %324 = vadd.xlane.f32.xlu0 %v322
    %v325 = vpop.xlane.xlu0 %324
    %326 = vadd.xlane.f32.xlu0 %v323
    %v327 = vpop.xlane.xlu0 %326
    %v328 = vadd.f32 %v319, %v325
    %v329 = vadd.f32 %v321, %v327
    %v330 = vmul.f32 %v328, %v301
    %v331 = vmul.f32 %v329, %v315
    %v332 = vmul.f32 %v156, %v268
    %v333 = vmul.f32 %v157, %v269
    %334 = vadd.xlane.f32.xlu0 %v332
    %v335 = vpop.xlane.xlu0 %334
    %336 = vadd.xlane.f32.xlu0 %v333
    %v337 = vpop.xlane.xlu0 %336
    %v338 = vmul.f32 %v335, %v301
    %v339 = vmul.f32 %v337, %v315
    %v340 = vadd.f32 %v330, %v338
    %v341 = vadd.f32 %v331, %v339
    %v342 = vmul.f32 %v340, -1.0
    %v343 = vmul.f32 %v341, -1.0
    %vm344 = vcmp.lt.s32.totalorder %v136, 8
    %vm345 = vcmp.lt.s32.totalorder %v137, 8
    %v346 = vsel %vm344, %v342, 0.0
    %v347 = vsel %vm345, %v343, 0.0
    %v348 = vadd.f32 %v346, %v347
    %v349 = vrot.slane %v348, 4
    %v350 = vadd.f32 %v348, %v349
    %v351 = vrot.slane %v350, 2
    %v352 = vadd.f32 %v350, %v351
    %v353 = vrot.slane %v352, 1
    %v354 = vadd.f32 %v352, %v353
    %355 = vst [vmem:[#allocation5] sm:$0x1] %v354
    // Predicated region
    $region22: #{tpu_custom_call.1} parent=1 // pred_check
      _
    $region23: #{tpu_custom_call.1} parent=1 // pred_check_branch
      %357 = sbr.rel (0) target = $region25
    $region24: #{tpu_custom_call.1} parent=1 // pred_region
      %359 = vsyncadd [#allocation4], 0
      %s361 = sshll.u32 [#allocation5], 4
      %s362 = int_to_ptr.vmem [resolvable:$true] %s361
      %s363 = sshll.u32 %s4, 4
      %s364 = int_to_ptr.hbm [resolvable:$true] %s363
      %366 = dma.vmem_to_hbm [thread:$0]  %s362, 16, %s364, [#allocation4]
    $region25: #{tpu_custom_call.1} parent=1 // pred_fallthru
      _
    // Predicated region
    $region26: #{tpu_custom_call.1} parent=1 // pred_check
      _
    $region27: #{tpu_custom_call.1} parent=1 // pred_check_branch
      %368 = sbr.rel (0) target = $region29
    $region28: #{tpu_custom_call.1} parent=1 // pred_region
      %370 = dma.done [#allocation4], 16
    $region29: #{tpu_custom_call.1} parent=1 // pred_fallthru
      _
    %371 = vsyncpa [#allocation3], 1
    %372 = vsyncpa [#allocation4], 1

</llo_original>
